<compile_context>
chip_gen: v7x
topology: tpu7x:2x2x1
jax: 0.10.0
libtpu: 0.0.40
codegen_flags: <defaults>
</compile_context>

<pallas_src>
from functools import partial

import jax
import jax.numpy as jnp
from jax.experimental import pallas as pl
from jax.experimental.pallas import tpu as pltpu


def _round_up(x, m):
    return (x + m - 1) // m * m


# -----------------------------------------------------------------------------
# Pallas kernel.
# Grid = (row tiles, vocab tiles).  h (post-LN hidden) is computed only on the
# first vocab tile of each row tile and cached in VMEM scratch.
# -----------------------------------------------------------------------------
def _mask_lm_head_kernel(f_ref, w1_ref, b1_ref, g_ref, be_ref, w2_ref, b2_ref,
                         o_ref, h_ref, *, d_true):
    @pl.when(pl.program_id(1) == 0)
    def _compute_hidden():
        # dense(embed, embed): bf16 MXU dot, f32 accumulation.
        h = jnp.dot(f_ref[...], w1_ref[...], preferred_element_type=jnp.float32)
        h = h + b1_ref[...]
        # activation_fn = ReLU (f32 elementwise).
        h = jnp.maximum(h, 0.0)
        # LayerNorm(embed_dim), eps = 1e-5 (torch default), one-pass stats.
        # Padded columns of h are exactly 0, so sums over the padded axis equal
        # sums over the true axis; divide by the TRUE embed dim.
        inv_d = 1.0 / d_true
        mu = jnp.sum(h, axis=-1, keepdims=True) * inv_d
        ex2 = jnp.sum(h * h, axis=-1, keepdims=True) * inv_d
        var = ex2 - mu * mu
        hn = (h - mu) * jax.lax.rsqrt(var + 1e-5)
        # gamma/beta are zero-padded -> padded columns come out exactly 0.
        h_ref[...] = (hn * g_ref[...] + be_ref[...]).astype(h_ref.dtype)

    # F.linear(x, weight) + bias on this vocab tile: bf16 MXU dot, f32 acc.
    o_ref[...] = (jnp.dot(h_ref[...], w2_ref[...],
                          preferred_element_type=jnp.float32)
                  + b2_ref[...]).astype(o_ref.dtype)


# -----------------------------------------------------------------------------
# Wrapper
# -----------------------------------------------------------------------------
def mask_lm_head(params, features, mask_tokens=None, *, tile_m=256,
                 max_tile_n=2048, out_dtype=jnp.bfloat16):
    """MaskLMHead.forward(features, mask_tokens) via a fused Pallas kernel."""
    if mask_tokens is not None:
        features = features[mask_tokens, :]

    m, d = features.shape
    v = params["w2t"].shape[1]

    # --- tiling / padding ----------------------------------------------------
    dp = _round_up(d, 128)                       # lane-dense embed dim
    vp = _round_up(v, 128)                       # lane-dense vocab dim
    if vp <= max_tile_n:
        tn = vp
    else:
        tn = next(c for c in (2048, 1024, 512, 256, 128) if vp % c == 0)

    tm = tile_m if m >= tile_m else max(16, _round_up(m, 16))
    m_pad = _round_up(max(m, 1), tm)

    # --- operands (bf16 for the MXU; biases / LN affine stay f32) -------------
    features = features.astype(jnp.bfloat16)
    features = jnp.pad(features, ((0, m_pad - m), (0, dp - d)))

    w1t = jnp.pad(params["w1t"].astype(jnp.bfloat16), ((0, dp - d), (0, dp - d)))
    w2t = jnp.pad(params["w2t"].astype(jnp.bfloat16), ((0, dp - d), (0, vp - v)))
    b1 = jnp.pad(params["b1"].astype(jnp.float32), (0, dp - d)).reshape(1, dp)
    # gamma/beta padded with ZEROS so padded hidden columns stay exactly 0.
    g = jnp.pad(params["gamma"].astype(jnp.float32), (0, dp - d)).reshape(1, dp)
    be = jnp.pad(params["beta"].astype(jnp.float32), (0, dp - d)).reshape(1, dp)
    b2 = jnp.pad(params["b2"].astype(jnp.float32), (0, vp - v)).reshape(1, vp)

    # --- VMEM budget (worst case: everything double-buffered) -----------------
    out_bytes = jnp.dtype(out_dtype).itemsize
    need = (2 * tm * dp * 2          # feature tile (bf16)
            + 2 * dp * dp * 2        # dense weight (bf16)
            + 2 * 3 * dp * 4         # b1, gamma, beta (f32)
            + 2 * dp * tn * 2        # output-weight tile (bf16)
            + 2 * tn * 4             # output-bias tile (f32)
            + 2 * tm * tn * out_bytes  # output tile
            + tm * dp * 2)           # h scratch (bf16)
    vmem_limit = int(min(max(int(need * 1.25), 32 * 1024 * 1024),
                         64 * 1024 * 1024))

    cost = pl.CostEstimate(
        flops=2 * m_pad * dp * dp + 2 * m_pad * dp * vp,
        transcendentals=m_pad,
        bytes_accessed=(m_pad * dp * 2 + dp * dp * 2
                        + (m_pad // tm) * dp * vp * 2
                        + m_pad * vp * out_bytes),
    )

    def _call(single_buffer_consts):
        const_kw = ({"pipeline_mode": pl.Buffered(1)}
                    if single_buffer_consts else {})
        in_specs = [
            # features tile: resident across the inner vocab axis.
            pl.BlockSpec((tm, dp), lambda i, j: (i, 0)),
            pl.BlockSpec((dp, dp), lambda i, j: (0, 0), **const_kw),  # dense W^T
            pl.BlockSpec((1, dp), lambda i, j: (0, 0), **const_kw),   # dense bias
            pl.BlockSpec((1, dp), lambda i, j: (0, 0), **const_kw),   # LN gamma
            pl.BlockSpec((1, dp), lambda i, j: (0, 0), **const_kw),   # LN beta
            pl.BlockSpec((dp, tn), lambda i, j: (0, j)),              # out W^T tile
            pl.BlockSpec((1, tn), lambda i, j: (0, j)),               # out bias tile
        ]
        return pl.pallas_call(
            partial(_mask_lm_head_kernel, d_true=d),
            out_shape=jax.ShapeDtypeStruct((m_pad, vp), out_dtype),
            grid=(m_pad // tm, vp // tn),
            in_specs=in_specs,
            out_specs=pl.BlockSpec((tm, tn), lambda i, j: (i, j)),
            scratch_shapes=[pltpu.VMEM((tm, dp), jnp.bfloat16)],
            compiler_params=pltpu.CompilerParams(
                dimension_semantics=("parallel", "arbitrary"),
                vmem_limit_bytes=vmem_limit),
            cost_estimate=cost,
        )(features, w1t, b1, g, be, w2t, b2)

    try:
        out = _call(True)
    except Exception:
        # pl.Buffered(1) not accepted by this JAX build -> default 2-deep bufs.
        out = _call(False)

    return out[:m, :v]


# -----------------------------------------------------------------------------
# Pure-JAX reference (f32) for a sanity check
# -----------------------------------------------------------------------------
def mask_lm_head_ref(params, features, mask_tokens=None):
    if mask_tokens is not None:
        features = features[mask_tokens, :]
    x = features @ params["w1t"] + params["b1"]
    x = jnp.maximum(x, 0.0)
    mu = jnp.mean(x, axis=-1, keepdims=True)
    var = jnp.mean((x - mu) ** 2, axis=-1, keepdims=True)
    x = (x - mu) * jax.lax.rsqrt(var + 1e-5)
    x = x * params["gamma"] + params["beta"]
    return x @ params["w2t"] + params["b2"]


# -----------------------------------------------------------------------------
if __name__ == "__main__":
    EMBED, OUT_DIM = 32, 32          # embed_dim, output_dim (num_atom_type)
    N, M = 16, 8                     # nodes, masked nodes

    key = jax.random.PRNGKey(0)
    k1, k2, k3, k4, k5, k6, k7, k8 = jax.random.split(key, 8)

    params = {
        # nn.Linear(embed, embed): weight stored transposed for x @ W^T.
        "w1t": jax.random.normal(k1, (EMBED, EMBED), jnp.float32) / (EMBED ** 0.5),
        "b1": 0.1 * jax.random.normal(k5, (EMBED,), jnp.float32),
        # nn.LayerNorm(embed)
        "gamma": 1.0 + 0.1 * jax.random.normal(k6, (EMBED,), jnp.float32),
        "beta": 0.1 * jax.random.normal(k7, (EMBED,), jnp.float32),
        # F.linear weight [OUT_DIM, EMBED] stored transposed; learned bias.
        "w2t": jax.random.normal(k2, (EMBED, OUT_DIM), jnp.float32) / (EMBED ** 0.5),
        "b2": 0.1 * jax.random.normal(k8, (OUT_DIM,), jnp.float32),
    }

    features = jax.random.normal(k3, (N, EMBED), jnp.float32)
    mask_tokens = jax.random.permutation(k4, N)[:M]

    out = mask_lm_head(params, features, mask_tokens)
    out = jax.block_until_ready(out)
    out_f32 = out.astype(jnp.float32)

    ref = mask_lm_head_ref(params, features, mask_tokens)
    assert out.shape == (M, OUT_DIM), out.shape
    assert bool(jnp.all(jnp.isfinite(out_f32)))
    # bf16 MXU dots + bf16 output vs f32 reference: loose tolerance.
    assert bool(jnp.allclose(out_f32, ref, atol=1e-1, rtol=1e-1)), \
        float(jnp.max(jnp.abs(out_f32 - ref)))
    print("KERNEL_OK")
</pallas_src>

<mosaic_0001>
module attributes {stable_mosaic.version = 11 : i64} {
  func.func @_mask_lm_head_kernel(%arg0: i32, %arg1: i32, %arg2: memref<16x128xbf16, #tpu.memory_space<vmem>>, %arg3: memref<128x128xbf16, #tpu.memory_space<vmem>>, %arg4: memref<1x128xf32, #tpu.memory_space<vmem>>, %arg5: memref<1x128xf32, #tpu.memory_space<vmem>>, %arg6: memref<1x128xf32, #tpu.memory_space<vmem>>, %arg7: memref<128x128xbf16, #tpu.memory_space<vmem>>, %arg8: memref<1x128xf32, #tpu.memory_space<vmem>>, %arg9: memref<16x128xbf16, #tpu.memory_space<vmem>>, %arg10: memref<16x128xbf16, #tpu.memory_space<vmem>>) attributes {dimension_semantics = [#tpu.dimension_semantics<parallel>, #tpu.dimension_semantics<arbitrary>], iteration_bounds = array<i64: 1, 1>, scalar_prefetch = 0 : i64, scratch_operands = 1 : i64, tpu.core_type = #tpu.core_type<tc>, window_params = [{transform_indices = @transform_0, window_bounds = array<i64: 16, 128>}, {pipeline_mode = #tpu.pipeline_mode<synchronous>, transform_indices = @transform_1, window_bounds = array<i64: 128, 128>}, {pipeline_mode = #tpu.pipeline_mode<synchronous>, transform_indices = @transform_2, window_bounds = array<i64: 1, 128>}, {pipeline_mode = #tpu.pipeline_mode<synchronous>, transform_indices = @transform_3, window_bounds = array<i64: 1, 128>}, {pipeline_mode = #tpu.pipeline_mode<synchronous>, transform_indices = @transform_4, window_bounds = array<i64: 1, 128>}, {transform_indices = @transform_5, window_bounds = array<i64: 128, 128>}, {transform_indices = @transform_6, window_bounds = array<i64: 1, 128>}, {transform_indices = @transform_7, window_bounds = array<i64: 16, 128>}]} {
    %c0_i32 = arith.constant 0 : i32
    %0 = arith.cmpi eq, %arg1, %c0_i32 : i32
    %1 = arith.extui %0 : i1 to i32
    %c0_i32_0 = arith.constant 0 : i32
    %2 = arith.cmpi ne, %1, %c0_i32_0 : i32
    scf.if %2 {
      %c0_8 = arith.constant 0 : index
      %c0_9 = arith.constant 0 : index
      %11 = vector.load %arg2[%c0_8, %c0_9] : memref<16x128xbf16, #tpu.memory_space<vmem>>, vector<16x128xbf16>
      %c0_10 = arith.constant 0 : index
      %c0_11 = arith.constant 0 : index
      %12 = vector.load %arg3[%c0_10, %c0_11] : memref<128x128xbf16, #tpu.memory_space<vmem>>, vector<128x128xbf16>
      %cst_12 = arith.constant dense<0.000000e+00> : vector<16x128xf32>
      %13 = tpu.matmul %11, %12, %cst_12 {dimension_numbers = #tpu.dot_dimension_numbers<[1], [0], [0], [1], [0, 0, 1, 1], [], []>} : vector<16x128xbf16>, vector<128x128xbf16>, vector<16x128xf32> -> vector<16x128xf32>
      %c0_13 = arith.constant 0 : index
      %c0_14 = arith.constant 0 : index
      %14 = vector.load %arg4[%c0_13, %c0_14] : memref<1x128xf32, #tpu.memory_space<vmem>>, vector<1x128xf32>
      %15 = vector.broadcast %14 : vector<1x128xf32> to vector<16x128xf32>
      %16 = arith.addf %13, %15 : vector<16x128xf32>
      %cst_15 = arith.constant 0.000000e+00 : f32
      %17 = vector.broadcast %cst_15 : f32 to vector<16x128xf32>
      %18 = arith.maximumf %16, %17 : vector<16x128xf32>
      %cst_16 = arith.constant dense<0.000000e+00> : vector<16xf32>
      %19 = vector.multi_reduction <add>, %18, %cst_16 [1] : vector<16x128xf32> to vector<16xf32>
      %20 = vector.shape_cast %19 : vector<16xf32> to vector<16x1xf32>
      %cst_17 = arith.constant 3.125000e-02 : f32
      %21 = vector.broadcast %cst_17 : f32 to vector<16x1xf32>
      %22 = arith.mulf %20, %21 : vector<16x1xf32>
      %23 = arith.mulf %18, %18 : vector<16x128xf32>
      %cst_18 = arith.constant dense<0.000000e+00> : vector<16xf32>
      %24 = vector.multi_reduction <add>, %23, %cst_18 [1] : vector<16x128xf32> to vector<16xf32>
      %25 = vector.shape_cast %24 : vector<16xf32> to vector<16x1xf32>
      %cst_19 = arith.constant 3.125000e-02 : f32
      %26 = vector.broadcast %cst_19 : f32 to vector<16x1xf32>
      %27 = arith.mulf %25, %26 : vector<16x1xf32>
      %28 = arith.mulf %22, %22 : vector<16x1xf32>
      %29 = arith.subf %27, %28 : vector<16x1xf32>
      %30 = vector.broadcast %22 : vector<16x1xf32> to vector<16x128xf32>
      %31 = arith.subf %18, %30 : vector<16x128xf32>
      %cst_20 = arith.constant 9.99999974E-6 : f32
      %32 = vector.broadcast %cst_20 : f32 to vector<16x1xf32>
      %33 = arith.addf %29, %32 : vector<16x1xf32>
      %34 = math.rsqrt %33 : vector<16x1xf32>
      %35 = vector.broadcast %34 : vector<16x1xf32> to vector<16x128xf32>
      %36 = arith.mulf %31, %35 : vector<16x128xf32>
      %c0_21 = arith.constant 0 : index
      %c0_22 = arith.constant 0 : index
      %37 = vector.load %arg5[%c0_21, %c0_22] : memref<1x128xf32, #tpu.memory_space<vmem>>, vector<1x128xf32>
      %38 = vector.broadcast %37 : vector<1x128xf32> to vector<16x128xf32>
      %39 = arith.mulf %36, %38 : vector<16x128xf32>
      %c0_23 = arith.constant 0 : index
      %c0_24 = arith.constant 0 : index
      %40 = vector.load %arg6[%c0_23, %c0_24] : memref<1x128xf32, #tpu.memory_space<vmem>>, vector<1x128xf32>
      %41 = vector.broadcast %40 : vector<1x128xf32> to vector<16x128xf32>
      %42 = arith.addf %39, %41 : vector<16x128xf32>
      %43 = arith.truncf %42 : vector<16x128xf32> to vector<16x128xbf16>
      %c0_25 = arith.constant 0 : index
      %c0_26 = arith.constant 0 : index
      %44 = vector.load %arg10[%c0_25, %c0_26] : memref<16x128xbf16, #tpu.memory_space<vmem>>, vector<16x128xbf16>
      tpu.vector_store %arg10[%c0_25, %c0_26], %43 {strides = array<i32>} : memref<16x128xbf16, #tpu.memory_space<vmem>>, vector<16x128xbf16>,
    } else {
    }
    %c0 = arith.constant 0 : index
    %c0_1 = arith.constant 0 : index
    %3 = vector.load %arg10[%c0, %c0_1] : memref<16x128xbf16, #tpu.memory_space<vmem>>, vector<16x128xbf16>
    %c0_2 = arith.constant 0 : index
    %c0_3 = arith.constant 0 : index
    %4 = vector.load %arg7[%c0_2, %c0_3] : memref<128x128xbf16, #tpu.memory_space<vmem>>, vector<128x128xbf16>
    %cst = arith.constant dense<0.000000e+00> : vector<16x128xf32>
    %5 = tpu.matmul %3, %4, %cst {dimension_numbers = #tpu.dot_dimension_numbers<[1], [0], [0], [1], [0, 0, 1, 1], [], []>} : vector<16x128xbf16>, vector<128x128xbf16>, vector<16x128xf32> -> vector<16x128xf32>
    %c0_4 = arith.constant 0 : index
    %c0_5 = arith.constant 0 : index
    %6 = vector.load %arg8[%c0_4, %c0_5] : memref<1x128xf32, #tpu.memory_space<vmem>>, vector<1x128xf32>
    %7 = vector.broadcast %6 : vector<1x128xf32> to vector<16x128xf32>
    %8 = arith.addf %5, %7 : vector<16x128xf32>
    %9 = arith.truncf %8 : vector<16x128xf32> to vector<16x128xbf16>
    %c0_6 = arith.constant 0 : index
    %c0_7 = arith.constant 0 : index
    %10 = vector.load %arg9[%c0_6, %c0_7] : memref<16x128xbf16, #tpu.memory_space<vmem>>, vector<16x128xbf16>
    tpu.vector_store %arg9[%c0_6, %c0_7], %9 {strides = array<i32>} : memref<16x128xbf16, #tpu.memory_space<vmem>>, vector<16x128xbf16>,
    return
  }
  func.func @transform_0(%arg0: i32, %arg1: i32) -> (i32, i32) {
    %c0_i32 = arith.constant 0 : i32
    %c0_i32_0 = arith.constant 0 : i32
    return %arg0, %c0_i32 : i32, i32
  }
  func.func @transform_1(%arg0: i32, %arg1: i32) -> (i32, i32) {
    %c0_i32 = arith.constant 0 : i32
    %c0_i32_0 = arith.constant 0 : i32
    %c0_i32_1 = arith.constant 0 : i32
    return %c0_i32, %c0_i32_0 : i32, i32
  }
  func.func @transform_2(%arg0: i32, %arg1: i32) -> (i32, i32) {
    %c0_i32 = arith.constant 0 : i32
    %c0_i32_0 = arith.constant 0 : i32
    %c0_i32_1 = arith.constant 0 : i32
    return %c0_i32, %c0_i32_0 : i32, i32
  }
  func.func @transform_3(%arg0: i32, %arg1: i32) -> (i32, i32) {
    %c0_i32 = arith.constant 0 : i32
    %c0_i32_0 = arith.constant 0 : i32
    %c0_i32_1 = arith.constant 0 : i32
    return %c0_i32, %c0_i32_0 : i32, i32
  }
  func.func @transform_4(%arg0: i32, %arg1: i32) -> (i32, i32) {
    %c0_i32 = arith.constant 0 : i32
    %c0_i32_0 = arith.constant 0 : i32
    %c0_i32_1 = arith.constant 0 : i32
    return %c0_i32, %c0_i32_0 : i32, i32
  }
  func.func @transform_5(%arg0: i32, %arg1: i32) -> (i32, i32) {
    %c0_i32 = arith.constant 0 : i32
    %c0_i32_0 = arith.constant 0 : i32
    return %c0_i32, %arg1 : i32, i32
  }
  func.func @transform_6(%arg0: i32, %arg1: i32) -> (i32, i32) {
    %c0_i32 = arith.constant 0 : i32
    %c0_i32_0 = arith.constant 0 : i32
    return %c0_i32, %arg1 : i32, i32
  }
  func.func @transform_7(%arg0: i32, %arg1: i32) -> (i32, i32) {
    %c0_i32 = arith.constant 0 : i32
    return %arg0, %arg1 : i32, i32
  }
}

module attributes {stable_mosaic.version = 11 : i64} {
  func.func @_mask_lm_head_kernel(%arg0: i32, %arg1: i32, %arg2: memref<16x128xbf16, #tpu.memory_space<vmem>>, %arg3: memref<128x128xbf16, #tpu.memory_space<vmem>>, %arg4: memref<1x128xf32, #tpu.memory_space<vmem>>, %arg5: memref<1x128xf32, #tpu.memory_space<vmem>>, %arg6: memref<1x128xf32, #tpu.memory_space<vmem>>, %arg7: memref<128x128xbf16, #tpu.memory_space<vmem>>, %arg8: memref<1x128xf32, #tpu.memory_space<vmem>>, %arg9: memref<16x128xbf16, #tpu.memory_space<vmem>>, %arg10: memref<16x128xbf16, #tpu.memory_space<vmem>>) attributes {dimension_semantics = [#tpu.dimension_semantics<parallel>, #tpu.dimension_semantics<arbitrary>], iteration_bounds = array<i64: 1, 1>, scalar_prefetch = 0 : i64, scratch_operands = 1 : i64, tpu.core_type = #tpu.core_type<tc>, window_params = [{transform_indices = @transform_0, window_bounds = array<i64: 16, 128>}, {pipeline_mode = #tpu.pipeline_mode<synchronous>, transform_indices = @transform_1, window_bounds = array<i64: 128, 128>}, {pipeline_mode = #tpu.pipeline_mode<synchronous>, transform_indices = @transform_2, window_bounds = array<i64: 1, 128>}, {pipeline_mode = #tpu.pipeline_mode<synchronous>, transform_indices = @transform_3, window_bounds = array<i64: 1, 128>}, {pipeline_mode = #tpu.pipeline_mode<synchronous>, transform_indices = @transform_4, window_bounds = array<i64: 1, 128>}, {transform_indices = @transform_5, window_bounds = array<i64: 128, 128>}, {transform_indices = @transform_6, window_bounds = array<i64: 1, 128>}, {transform_indices = @transform_7, window_bounds = array<i64: 16, 128>}]} {
    %c0_i32 = arith.constant 0 : i32
    %0 = arith.cmpi eq, %arg1, %c0_i32 : i32
    %1 = arith.extui %0 : i1 to i32
    %c0_i32_0 = arith.constant 0 : i32
    %2 = arith.cmpi ne, %1, %c0_i32_0 : i32
    scf.if %2 {
      %c0_8 = arith.constant 0 : index
      %c0_9 = arith.constant 0 : index
      %11 = vector.load %arg2[%c0_8, %c0_9] : memref<16x128xbf16, #tpu.memory_space<vmem>>, vector<16x128xbf16>
      %c0_10 = arith.constant 0 : index
      %c0_11 = arith.constant 0 : index
      %12 = vector.load %arg3[%c0_10, %c0_11] : memref<128x128xbf16, #tpu.memory_space<vmem>>, vector<128x128xbf16>
      %cst_12 = arith.constant dense<0.000000e+00> : vector<16x128xf32>
      %13 = tpu.matmul %11, %12, %cst_12 {dimension_numbers = #tpu.dot_dimension_numbers<[1], [0], [0], [1], [0, 0, 1, 1], [], []>} : vector<16x128xbf16>, vector<128x128xbf16>, vector<16x128xf32> -> vector<16x128xf32>
      %c0_13 = arith.constant 0 : index
      %c0_14 = arith.constant 0 : index
      %14 = vector.load %arg4[%c0_13, %c0_14] : memref<1x128xf32, #tpu.memory_space<vmem>>, vector<1x128xf32>
      %15 = vector.broadcast %14 : vector<1x128xf32> to vector<16x128xf32>
      %16 = arith.addf %13, %15 : vector<16x128xf32>
      %cst_15 = arith.constant 0.000000e+00 : f32
      %17 = vector.broadcast %cst_15 : f32 to vector<16x128xf32>
      %18 = arith.maximumf %16, %17 : vector<16x128xf32>
      %cst_16 = arith.constant dense<0.000000e+00> : vector<16xf32>
      %19 = vector.multi_reduction <add>, %18, %cst_16 [1] : vector<16x128xf32> to vector<16xf32>
      %20 = vector.shape_cast %19 : vector<16xf32> to vector<16x1xf32>
      %cst_17 = arith.constant 3.125000e-02 : f32
      %21 = vector.broadcast %cst_17 : f32 to vector<16x1xf32>
      %22 = arith.mulf %20, %21 : vector<16x1xf32>
      %23 = arith.mulf %18, %18 : vector<16x128xf32>
      %cst_18 = arith.constant dense<0.000000e+00> : vector<16xf32>
      %24 = vector.multi_reduction <add>, %23, %cst_18 [1] : vector<16x128xf32> to vector<16xf32>
      %25 = vector.shape_cast %24 : vector<16xf32> to vector<16x1xf32>
      %cst_19 = arith.constant 3.125000e-02 : f32
      %26 = vector.broadcast %cst_19 : f32 to vector<16x1xf32>
      %27 = arith.mulf %25, %26 : vector<16x1xf32>
      %28 = arith.mulf %22, %22 : vector<16x1xf32>
      %29 = arith.subf %27, %28 : vector<16x1xf32>
      %30 = vector.broadcast %22 : vector<16x1xf32> to vector<16x128xf32>
      %31 = arith.subf %18, %30 : vector<16x128xf32>
      %cst_20 = arith.constant 9.99999974E-6 : f32
      %32 = vector.broadcast %cst_20 : f32 to vector<16x1xf32>
      %33 = arith.addf %29, %32 : vector<16x1xf32>
      %34 = math.rsqrt %33 : vector<16x1xf32>
      %35 = vector.broadcast %34 : vector<16x1xf32> to vector<16x128xf32>
      %36 = arith.mulf %31, %35 : vector<16x128xf32>
      %c0_21 = arith.constant 0 : index
      %c0_22 = arith.constant 0 : index
      %37 = vector.load %arg5[%c0_21, %c0_22] : memref<1x128xf32, #tpu.memory_space<vmem>>, vector<1x128xf32>
      %38 = vector.broadcast %37 : vector<1x128xf32> to vector<16x128xf32>
      %39 = arith.mulf %36, %38 : vector<16x128xf32>
      %c0_23 = arith.constant 0 : index
      %c0_24 = arith.constant 0 : index
      %40 = vector.load %arg6[%c0_23, %c0_24] : memref<1x128xf32, #tpu.memory_space<vmem>>, vector<1x128xf32>
      %41 = vector.broadcast %40 : vector<1x128xf32> to vector<16x128xf32>
      %42 = arith.addf %39, %41 : vector<16x128xf32>
      %43 = arith.truncf %42 : vector<16x128xf32> to vector<16x128xbf16>
      %c0_25 = arith.constant 0 : index
      %c0_26 = arith.constant 0 : index
      %44 = vector.load %arg10[%c0_25, %c0_26] : memref<16x128xbf16, #tpu.memory_space<vmem>>, vector<16x128xbf16>
      tpu.vector_store %arg10[%c0_25, %c0_26], %43 {strides = array<i32>} : memref<16x128xbf16, #tpu.memory_space<vmem>>, vector<16x128xbf16>,
    } else {
    }
    %c0 = arith.constant 0 : index
    %c0_1 = arith.constant 0 : index
    %3 = vector.load %arg10[%c0, %c0_1] : memref<16x128xbf16, #tpu.memory_space<vmem>>, vector<16x128xbf16>
    %c0_2 = arith.constant 0 : index
    %c0_3 = arith.constant 0 : index
    %4 = vector.load %arg7[%c0_2, %c0_3] : memref<128x128xbf16, #tpu.memory_space<vmem>>, vector<128x128xbf16>
    %cst = arith.constant dense<0.000000e+00> : vector<16x128xf32>
    %5 = tpu.matmul %3, %4, %cst {dimension_numbers = #tpu.dot_dimension_numbers<[1], [0], [0], [1], [0, 0, 1, 1], [], []>} : vector<16x128xbf16>, vector<128x128xbf16>, vector<16x128xf32> -> vector<16x128xf32>
    %c0_4 = arith.constant 0 : index
    %c0_5 = arith.constant 0 : index
    %6 = vector.load %arg8[%c0_4, %c0_5] : memref<1x128xf32, #tpu.memory_space<vmem>>, vector<1x128xf32>
    %7 = vector.broadcast %6 : vector<1x128xf32> to vector<16x128xf32>
    %8 = arith.addf %5, %7 : vector<16x128xf32>
    %9 = arith.truncf %8 : vector<16x128xf32> to vector<16x128xbf16>
    %c0_6 = arith.constant 0 : index
    %c0_7 = arith.constant 0 : index
    %10 = vector.load %arg9[%c0_6, %c0_7] : memref<16x128xbf16, #tpu.memory_space<vmem>>, vector<16x128xbf16>
    tpu.vector_store %arg9[%c0_6, %c0_7], %9 {strides = array<i32>} : memref<16x128xbf16, #tpu.memory_space<vmem>>, vector<16x128xbf16>,
    return
  }
  func.func @transform_0(%arg0: i32, %arg1: i32) -> (i32, i32) {
    %c0_i32 = arith.constant 0 : i32
    %c0_i32_0 = arith.constant 0 : i32
    return %arg0, %c0_i32 : i32, i32
  }
  func.func @transform_1(%arg0: i32, %arg1: i32) -> (i32, i32) {
    %c0_i32 = arith.constant 0 : i32
    %c0_i32_0 = arith.constant 0 : i32
    %c0_i32_1 = arith.constant 0 : i32
    return %c0_i32, %c0_i32_0 : i32, i32
  }
  func.func @transform_2(%arg0: i32, %arg1: i32) -> (i32, i32) {
    %c0_i32 = arith.constant 0 : i32
    %c0_i32_0 = arith.constant 0 : i32
    %c0_i32_1 = arith.constant 0 : i32
    return %c0_i32, %c0_i32_0 : i32, i32
  }
  func.func @transform_3(%arg0: i32, %arg1: i32) -> (i32, i32) {
    %c0_i32 = arith.constant 0 : i32
    %c0_i32_0 = arith.constant 0 : i32
    %c0_i32_1 = arith.constant 0 : i32
    return %c0_i32, %c0_i32_0 : i32, i32
  }
  func.func @transform_4(%arg0: i32, %arg1: i32) -> (i32, i32) {
    %c0_i32 = arith.constant 0 : i32
    %c0_i32_0 = arith.constant 0 : i32
    %c0_i32_1 = arith.constant 0 : i32
    return %c0_i32, %c0_i32_0 : i32, i32
  }
  func.func @transform_5(%arg0: i32, %arg1: i32) -> (i32, i32) {
    %c0_i32 = arith.constant 0 : i32
    %c0_i32_0 = arith.constant 0 : i32
    return %c0_i32, %arg1 : i32, i32
  }
  func.func @transform_6(%arg0: i32, %arg1: i32) -> (i32, i32) {
    %c0_i32 = arith.constant 0 : i32
    %c0_i32_0 = arith.constant 0 : i32
    return %c0_i32, %arg1 : i32, i32
  }
  func.func @transform_7(%arg0: i32, %arg1: i32) -> (i32, i32) {
    %c0_i32 = arith.constant 0 : i32
    return %arg0, %arg1 : i32, i32
  }
}

</mosaic_0001>

<llo_original>
// kernel: tpu_custom_call.1
$region0: #{tpu_custom_call.1}
  #allocation0 [shape = 'u32[]', space=smem, size = 0x4, offset = 0x4, fixed_abs, tag = 'smem constant byte address 0x4 - core index']
  #allocation1 [shape = 'u32[144,128]{1,0:T(1,128)}', space=vmem, size = 0x12000, scoped, tag = 'internal scratch']
  #allocation2 [shape = 'bf16[16,128]{1,0:T(16,128)(2,1)}', space=vmem, size = 0x1000, scoped, tag = 'scratch operand']
  %s0 = inlined_call_operand.hbm [shape: bf16[16,128], index: 0, kind: input, shape index: {}]
  %s1 = inlined_call_operand.hbm [shape: bf16[128,128], index: 1, kind: input, shape index: {}]
  %s2 = inlined_call_operand.vmem [shape: f32[1,128], index: 2, kind: input, shape index: {}]
  %s3 = inlined_call_operand.vmem [shape: f32[1,128], index: 3, kind: input, shape index: {}]
  %s4 = inlined_call_operand.vmem [shape: f32[1,128], index: 4, kind: input, shape index: {}]
  %s5 = inlined_call_operand.hbm [shape: bf16[128,128], index: 5, kind: input, shape index: {}]
  %s6 = inlined_call_operand.vmem [shape: f32[1,128], index: 6, kind: input, shape index: {}]
  %s7 = inlined_call_operand.hbm [shape: bf16[16,128], index: 7, kind: output, shape index: {}]
  %s8 = sld [smem:[#allocation0]]
  $region54: #{tpu_custom_call.1} parent=0
    _
  %s10 = ssub.s32 1, %s8
  %s11 = scalar_select 0, %s10, %s8
  $region1: #{tpu_custom_call.1} parent=0
    #allocation3 [shape = 'u8[4096]{0}', space=vmem, size = 0x1000, scoped, tag = 'input window, operand 0, single buffered']
    #allocation4 [shape = 's32[1]{0}', space=sflag, size = 0x4, scoped, tag = 'scoped memory for tpu_custom_call.1']
    #allocation5 [shape = 's32[1]{0}', space=sflag, size = 0x4, scoped, tag = 'scoped memory for tpu_custom_call.1']
    #allocation6 [shape = 'u8[32768]{0}', space=vmem, size = 0x8000, scoped, tag = 'input window, operand 1, single buffered']
    #allocation7 [shape = 's32[1]{0}', space=sflag, size = 0x4, scoped, tag = 'scoped memory for tpu_custom_call.1']
    #allocation8 [shape = 'u8[32768]{0}', space=vmem, size = 0x8000, scoped, tag = 'input window, operand 5, single buffered']
    #allocation9 [shape = 'u8[4096]{0}', space=vmem, size = 0x1000, scoped, tag = 'output window, operand 0, single buffered']
    %12 = vsyncpa [#allocation4], 0
    %13 = vsyncpa [#allocation7], 0
    %14 = vsyncpa [#allocation5], 0
    // Predicated region
    $region2: #{tpu_custom_call.1} parent=1 // pred_check
      _
    $region3: #{tpu_custom_call.1} parent=1 // pred_check_branch
      %16 = sbr.rel (0) target = $region5
    $region4: #{tpu_custom_call.1} parent=1 // pred_region
      %s18 = ssub.s32 128, 128
      %19 = vsyncadd [#allocation4], %s18
      %s20 = sshll.u32 [#allocation3], 4
      %s21 = int_to_ptr.vmem [resolvable:$true] %s20
      %26 = dma.hbm_to_vmem [thread:$0]  %s0, 128, %s21, [#allocation4], 64, 64, 4
    $region5: #{tpu_custom_call.1} parent=1 // pred_fallthru
      _
    // Predicated region
    $region6: #{tpu_custom_call.1} parent=1 // pred_check
      _
    $region7: #{tpu_custom_call.1} parent=1 // pred_check_branch
      %28 = sbr.rel (0) target = $region9
    $region8: #{tpu_custom_call.1} parent=1 // pred_region
      %s30 = ssub.s32 1024, 1024
      %31 = vsyncadd [#allocation7], %s30
      %s32 = sshll.u32 [#allocation6], 4
      %s33 = int_to_ptr.vmem [resolvable:$true] %s32
      %38 = dma.hbm_to_vmem [thread:$0]  %s1, 1024, %s33, [#allocation7], 64, 64, 4
    $region9: #{tpu_custom_call.1} parent=1 // pred_fallthru
      _
    // Predicated region
    $region10: #{tpu_custom_call.1} parent=1 // pred_check
      _
    $region11: #{tpu_custom_call.1} parent=1 // pred_check_branch
      %40 = sbr.rel (0) target = $region13
    $region12: #{tpu_custom_call.1} parent=1 // pred_region
      _
    $region13: #{tpu_custom_call.1} parent=1 // pred_fallthru
      _
    // Predicated region
    $region14: #{tpu_custom_call.1} parent=1 // pred_check
      _
    $region15: #{tpu_custom_call.1} parent=1 // pred_check_branch
      %42 = sbr.rel (0) target = $region17
    $region16: #{tpu_custom_call.1} parent=1 // pred_region
      _
    $region17: #{tpu_custom_call.1} parent=1 // pred_fallthru
      _
    // Predicated region
    $region18: #{tpu_custom_call.1} parent=1 // pred_check
      _
    $region19: #{tpu_custom_call.1} parent=1 // pred_check_branch
      %44 = sbr.rel (0) target = $region21
    $region20: #{tpu_custom_call.1} parent=1 // pred_region
      _
    $region21: #{tpu_custom_call.1} parent=1 // pred_fallthru
      _
    // Predicated region
    $region22: #{tpu_custom_call.1} parent=1 // pred_check
      _
    $region23: #{tpu_custom_call.1} parent=1 // pred_check_branch
      %46 = sbr.rel (0) target = $region25
    $region24: #{tpu_custom_call.1} parent=1 // pred_region
      %s48 = ssub.s32 1024, 1024
      %49 = vsyncadd [#allocation7], %s48
      %s50 = sshll.u32 [#allocation8], 4
      %s51 = int_to_ptr.vmem [resolvable:$true] %s50
      %56 = dma.hbm_to_vmem [thread:$0]  %s5, 1024, %s51, [#allocation7], 64, 64, 4
    $region25: #{tpu_custom_call.1} parent=1 // pred_fallthru
      _
    // Predicated region
    $region26: #{tpu_custom_call.1} parent=1 // pred_check
      _
    $region27: #{tpu_custom_call.1} parent=1 // pred_check_branch
      %58 = sbr.rel (0) target = $region29
    $region28: #{tpu_custom_call.1} parent=1 // pred_region
      _
    $region29: #{tpu_custom_call.1} parent=1 // pred_fallthru
      _
    // Predicated region
    $region30: #{tpu_custom_call.1} parent=1 // pred_check
      _
    $region31: #{tpu_custom_call.1} parent=1 // pred_check_branch
      %60 = sbr.rel (0) target = $region33
    $region32: #{tpu_custom_call.1} parent=1 // pred_region
      %61 = dma.done [#allocation4], 128
    $region33: #{tpu_custom_call.1} parent=1 // pred_fallthru
      _
    // Predicated region
    $region34: #{tpu_custom_call.1} parent=1 // pred_check
      _
    $region35: #{tpu_custom_call.1} parent=1 // pred_check_branch
      %63 = sbr.rel (0) target = $region37
    $region36: #{tpu_custom_call.1} parent=1 // pred_region
      %64 = dma.done [#allocation7], 1024
    $region37: #{tpu_custom_call.1} parent=1 // pred_fallthru
      _
    // Predicated region
    $region38: #{tpu_custom_call.1} parent=1 // pred_check
      _
    $region39: #{tpu_custom_call.1} parent=1 // pred_check_branch
      %66 = sbr.rel (0) target = $region41
    $region40: #{tpu_custom_call.1} parent=1 // pred_region
      %67 = dma.done [#allocation7], 1024
    $region41: #{tpu_custom_call.1} parent=1 // pred_fallthru
      _
    %p69 = scmp.eq.s32.totalorder 0, 0
    // Predicated region
    $region42: #{tpu_custom_call.1} parent=1 // pred_check
      %p70 = pneg %p69
    $region43: #{tpu_custom_call.1} parent=1 // pred_check_branch
      %72 = sbr.rel (%p70) target = $region45
    $region44: #{tpu_custom_call.1} parent=1 // pred_region
      %v73 = vld [vmem:[#allocation3] sm:$0xf]
      %v74 = vld [vmem:[#allocation3 + $0x4] sm:$0xf]
      %v75 = vld [vmem:[#allocation6] sm:$0xf]
      %v76 = vld [vmem:[#allocation6 + $0x4] sm:$0xf]
      %v77 = vld [vmem:[#allocation6 + $0x8] sm:$0xf]
      %v78 = vld [vmem:[#allocation6 + $0xc] sm:$0xf]
      %v79 = vld [vmem:[#allocation6 + $0x10] sm:$0xf]
      %v80 = vld [vmem:[#allocation6 + $0x14] sm:$0xf]
      %v81 = vld [vmem:[#allocation6 + $0x18] sm:$0xf]
      %v82 = vld [vmem:[#allocation6 + $0x1c] sm:$0xf]
      %v83 = vld [vmem:[#allocation6 + $0x20] sm:$0xf]
      %v84 = vld [vmem:[#allocation6 + $0x24] sm:$0xf]
      %v85 = vld [vmem:[#allocation6 + $0x28] sm:$0xf]
      %v86 = vld [vmem:[#allocation6 + $0x2c] sm:$0xf]
      %v87 = vld [vmem:[#allocation6 + $0x30] sm:$0xf]
      %v88 = vld [vmem:[#allocation6 + $0x34] sm:$0xf]
      %v89 = vld [vmem:[#allocation6 + $0x38] sm:$0xf]
      %v90 = vld [vmem:[#allocation6 + $0x3c] sm:$0xf]
      %v91 = vld [vmem:[%s2] sm:$0x1]
      %v93 = vlaneseq
      %v94 = vshrl.u32 %v93, 7
      %v95 = vsub.s32 0, %v94
      %v96 = vrot.slane %v91, %v95
      %v100 = vunpack.c.l.b16 %v73
      %v101 = vunpack.c.l.b16 %v74
      %v102 = vpack.c.b16 %v101, %v100
      %v120 = vunpack.c.l.b16 %v75
      %v121 = vunpack.c.l.b16 %v76
      %v122 = vunpack.c.l.b16 %v77
      %v123 = vunpack.c.l.b16 %v78
      %v124 = vunpack.c.l.b16 %v79
      %v125 = vunpack.c.l.b16 %v80
      %v126 = vunpack.c.l.b16 %v81
      %v127 = vunpack.c.l.b16 %v82
      %v128 = vunpack.c.l.b16 %v83
      %v129 = vunpack.c.l.b16 %v84
      %v130 = vunpack.c.l.b16 %v85
      %v131 = vunpack.c.l.b16 %v86
      %v132 = vunpack.c.l.b16 %v87
      %v133 = vunpack.c.l.b16 %v88
      %v134 = vunpack.c.l.b16 %v89
      %v135 = vunpack.c.l.b16 %v90
      %v136 = vpack.c.b16 %v121, %v120
      %v137 = vpack.c.b16 %v123, %v122
      %v138 = vpack.c.b16 %v125, %v124
      %v139 = vpack.c.b16 %v127, %v126
      %v140 = vpack.c.b16 %v129, %v128
      %v141 = vpack.c.b16 %v131, %v130
      %v142 = vpack.c.b16 %v133, %v132
      %v143 = vpack.c.b16 %v135, %v134
      %152 = vmatprep.subr.bf16.mxu0 0
      %153 = vmatpush1.bf16.msra.mxu0 %v136
      %154 = vmatprep.subr.bf16.mxu0 0
      %155 = vmatpush1.bf16.msra.mxu0 %v137
      %156 = vmatprep.subr.bf16.mxu0 0
      %157 = vmatpush1.bf16.msra.mxu0 %v138
      %158 = vmatprep.subr.bf16.mxu0 0
      %159 = vmatpush1.bf16.msra.mxu0 %v139
      %160 = vmatprep.subr.bf16.mxu0 0
      %161 = vmatpush1.bf16.msra.mxu0 %v140
      %162 = vmatprep.subr.bf16.mxu0 0
      %163 = vmatpush1.bf16.msra.mxu0 %v141
      %164 = vmatprep.subr.bf16.mxu0 0
      %165 = vmatpush1.bf16.msra.mxu0 %v142
      %166 = vmatprep.subr.bf16.mxu0 0
      %167 = vmatpush1.bf16.msra.mxu0 %v143
      %168 = vmatprep.subr.bf16.mxu0 0
      %169 = vmatpush1.bf16.msra.mxu0 0
      %170 = vmatprep.subr.bf16.mxu0 0
      %171 = vmatpush1.bf16.msra.mxu0 0
      %172 = vmatprep.subr.bf16.mxu0 0
      %173 = vmatpush1.bf16.msra.mxu0 0
      %174 = vmatprep.subr.bf16.mxu0 0
      %175 = vmatpush1.bf16.msra.mxu0 0
      %176 = vmatprep.subr.bf16.mxu0 0
      %177 = vmatpush1.bf16.msra.mxu0 0
      %178 = vmatprep.subr.bf16.mxu0 0
      %179 = vmatpush1.bf16.msra.mxu0 0
      %180 = vmatprep.subr.bf16.mxu0 0
      %181 = vmatpush1.bf16.msra.mxu0 0
      %182 = vmatprep.subr.bf16.mxu0 0
      %183 = vmatpush1.bf16.msra.mxu0 0
      %184 = vmatprep.mubr.bf16.mxu0 0
      %185 = vmatmul.mubr.bf16.gmra.mrb[0].mxu0 %v102
      %v186 = vpop.f32.mrb[0].mxu0
      %v187 = vadd.f32 %v96, %v186
      %v188 = vpop.f32.mrb[0].mxu0
      %v189 = vpop.f32.mrb[0].mxu0
      %v190 = vadd.f32 %v96, %v189
      %v191 = vpop.f32.mrb[0].mxu0
      %192 = vdwg.mxu0
      %v193 = vmax.f32 %v187, 0.0
      %v194 = vmax.f32 %v190, 0.0
      %195 = vadd.xlane.f32.xlu0 %v193
      %v196 = vpop.xlane.xlu0 %195
      %197 = vadd.xlane.f32.xlu0 %v194
      %v198 = vpop.xlane.xlu0 %197
      %v199 = vmul.f32 %v196, 0.03125
      %v200 = vmul.f32 %v198, 0.03125
      %v201 = vmul.f32 %v193, %v193
      %v202 = vmul.f32 %v194, %v194
      %203 = vadd.xlane.f32.xlu0 %v201
      %v204 = vpop.xlane.xlu0 %203
      %205 = vadd.xlane.f32.xlu0 %v202
      %v206 = vpop.xlane.xlu0 %205
      %v207 = vmul.f32 %v204, 0.03125
      %v208 = vmul.f32 %v206, 0.03125
      %v209 = vmul.f32 %v199, %v199
      %v210 = vmul.f32 %v200, %v200
      %v211 = vsub.f32 %v207, %v209
      %v212 = vsub.f32 %v208, %v210
      %v213 = vsub.f32 %v193, %v199
      %v214 = vsub.f32 %v194, %v200
      %v215 = vadd.f32 %v211, 1e-05
      %v216 = vadd.f32 %v212, 1e-05
      %v217 = vrsqrt.pop %v215
      %v218 = vrsqrt.pop %v216
      %v219 = vmul.f32 %v213, %v217
      %v220 = vmul.f32 %v214, %v218
      %v221 = vld [vmem:[%s3] sm:$0x1]
      %v223 = vlaneseq
      %v224 = vshrl.u32 %v223, 7
      %v225 = vsub.s32 0, %v224
      %v226 = vrot.slane %v221, %v225
      %v228 = vmul.f32 %v219, %v226
      %v229 = vmul.f32 %v220, %v226
      %v230 = vld [vmem:[%s4] sm:$0x1]
      %v232 = vlaneseq
      %v233 = vshrl.u32 %v232, 7
      %v234 = vsub.s32 0, %v233
      %v235 = vrot.slane %v230, %v234
      %v237 = vadd.f32 %v228, %v235
      %v238 = vadd.f32 %v229, %v235
      %v239 = vpack.c.bf16 %v238, %v237
      %240 = vst [vmem:[#allocation2] sm:$0xff] %v239
    $region45: #{tpu_custom_call.1} parent=1 // pred_fallthru
      _
    %v241 = vld [vmem:[#allocation2] sm:$0xff]
    %v242 = vld [vmem:[#allocation8] sm:$0xf]
    %v243 = vld [vmem:[#allocation8 + $0x4] sm:$0xf]
    %v244 = vld [vmem:[#allocation8 + $0x8] sm:$0xf]
    %v245 = vld [vmem:[#allocation8 + $0xc] sm:$0xf]
    %v246 = vld [vmem:[#allocation8 + $0x10] sm:$0xf]
    %v247 = vld [vmem:[#allocation8 + $0x14] sm:$0xf]
    %v248 = vld [vmem:[#allocation8 + $0x18] sm:$0xf]
    %v249 = vld [vmem:[#allocation8 + $0x1c] sm:$0xf]
    %v250 = vld [vmem:[#allocation8 + $0x20] sm:$0xf]
    %v251 = vld [vmem:[#allocation8 + $0x24] sm:$0xf]
    %v252 = vld [vmem:[#allocation8 + $0x28] sm:$0xf]
    %v253 = vld [vmem:[#allocation8 + $0x2c] sm:$0xf]
    %v254 = vld [vmem:[#allocation8 + $0x30] sm:$0xf]
    %v255 = vld [vmem:[#allocation8 + $0x34] sm:$0xf]
    %v256 = vld [vmem:[#allocation8 + $0x38] sm:$0xf]
    %v257 = vld [vmem:[#allocation8 + $0x3c] sm:$0xf]
    %v258 = vld [vmem:[%s6] sm:$0x1]
    %v260 = vlaneseq
    %v261 = vshrl.u32 %v260, 7
    %v262 = vsub.s32 0, %v261
    %v263 = vrot.slane %v258, %v262
    %v281 = vunpack.c.l.b16 %v242
    %v282 = vunpack.c.l.b16 %v243
    %v283 = vunpack.c.l.b16 %v244
    %v284 = vunpack.c.l.b16 %v245
    %v285 = vunpack.c.l.b16 %v246
    %v286 = vunpack.c.l.b16 %v247
    %v287 = vunpack.c.l.b16 %v248
    %v288 = vunpack.c.l.b16 %v249
    %v289 = vunpack.c.l.b16 %v250
    %v290 = vunpack.c.l.b16 %v251
    %v291 = vunpack.c.l.b16 %v252
    %v292 = vunpack.c.l.b16 %v253
    %v293 = vunpack.c.l.b16 %v254
    %v294 = vunpack.c.l.b16 %v255
    %v295 = vunpack.c.l.b16 %v256
    %v296 = vunpack.c.l.b16 %v257
    %v297 = vpack.c.b16 %v282, %v281
    %v298 = vpack.c.b16 %v284, %v283
    %v299 = vpack.c.b16 %v286, %v285
    %v300 = vpack.c.b16 %v288, %v287
    %v301 = vpack.c.b16 %v290, %v289
    %v302 = vpack.c.b16 %v292, %v291
    %v303 = vpack.c.b16 %v294, %v293
    %v304 = vpack.c.b16 %v296, %v295
    %313 = vmatprep.subr.bf16.mxu0 0
    %314 = vmatpush1.bf16.msra.mxu0 %v297
    %315 = vmatprep.subr.bf16.mxu0 0
    %316 = vmatpush1.bf16.msra.mxu0 %v298
    %317 = vmatprep.subr.bf16.mxu0 0
    %318 = vmatpush1.bf16.msra.mxu0 %v299
    %319 = vmatprep.subr.bf16.mxu0 0
    %320 = vmatpush1.bf16.msra.mxu0 %v300
    %321 = vmatprep.subr.bf16.mxu0 0
    %322 = vmatpush1.bf16.msra.mxu0 %v301
    %323 = vmatprep.subr.bf16.mxu0 0
    %324 = vmatpush1.bf16.msra.mxu0 %v302
    %325 = vmatprep.subr.bf16.mxu0 0
    %326 = vmatpush1.bf16.msra.mxu0 %v303
    %327 = vmatprep.subr.bf16.mxu0 0
    %328 = vmatpush1.bf16.msra.mxu0 %v304
    %329 = vmatprep.subr.bf16.mxu0 0
    %330 = vmatpush1.bf16.msra.mxu0 0
    %331 = vmatprep.subr.bf16.mxu0 0
    %332 = vmatpush1.bf16.msra.mxu0 0
    %333 = vmatprep.subr.bf16.mxu0 0
    %334 = vmatpush1.bf16.msra.mxu0 0
    %335 = vmatprep.subr.bf16.mxu0 0
    %336 = vmatpush1.bf16.msra.mxu0 0
    %337 = vmatprep.subr.bf16.mxu0 0
    %338 = vmatpush1.bf16.msra.mxu0 0
    %339 = vmatprep.subr.bf16.mxu0 0
    %340 = vmatpush1.bf16.msra.mxu0 0
    %341 = vmatprep.subr.bf16.mxu0 0
    %342 = vmatpush1.bf16.msra.mxu0 0
    %343 = vmatprep.subr.bf16.mxu0 0
    %344 = vmatpush1.bf16.msra.mxu0 0
    %345 = vmatprep.mubr.bf16.mxu0 0
    %346 = vmatmul.mubr.bf16.gmra.mrb[0].mxu0 %v241
    %v347 = vpop.f32.mrb[0].mxu0
    %v348 = vadd.f32 %v263, %v347
    %v349 = vpop.f32.mrb[0].mxu0
    %v350 = vpop.f32.mrb[0].mxu0
    %v351 = vadd.f32 %v263, %v350
    %v352 = vpop.f32.mrb[0].mxu0
    %353 = vdwg.mxu0
    %v354 = vpack.c.bf16 %v351, %v348
    %v356 = vunpack.c.l.b16 %v354
    %v357 = vunpack.c.h.b16 %v354
    %v358 = vpack.c.b16 %v356, %v356
    %v359 = vpack.c.b16 %v357, %v357
    %362 = vst [vmem:[#allocation9] sm:$0xf] %v358
    %363 = vst [vmem:[#allocation9 + $0x4] sm:$0xf] %v359
    // Predicated region
    $region46: #{tpu_custom_call.1} parent=1 // pred_check
      _
    $region47: #{tpu_custom_call.1} parent=1 // pred_check_branch
      %365 = sbr.rel (0) target = $region49
    $region48: #{tpu_custom_call.1} parent=1 // pred_region
      %s367 = ssub.s32 128, 128
      %368 = vsyncadd [#allocation5], %s367
      %s369 = sshll.u32 [#allocation9], 4
      %s370 = int_to_ptr.vmem [resolvable:$true] %s369
      %375 = dma.vmem_to_hbm [thread:$0]  %s370, 128, %s7, [#allocation5], 64, 64, 4
    $region49: #{tpu_custom_call.1} parent=1 // pred_fallthru
      _
    // Predicated region
    $region50: #{tpu_custom_call.1} parent=1 // pred_check
      _
    $region51: #{tpu_custom_call.1} parent=1 // pred_check_branch
      %377 = sbr.rel (0) target = $region53
    $region52: #{tpu_custom_call.1} parent=1 // pred_region
      %378 = dma.done [#allocation5], 128
    $region53: #{tpu_custom_call.1} parent=1 // pred_fallthru
      _
    %379 = vsyncpa [#allocation4], 1
    %380 = vsyncpa [#allocation7], 1
    %381 = vsyncpa [#allocation5], 1

// kernel: tpu_custom_call.1
$region0: #{tpu_custom_call.1}
  #allocation0 [shape = 'u32[]', space=smem, size = 0x4, offset = 0x4, fixed_abs, tag = 'smem constant byte address 0x4 - core index']
  #allocation1 [shape = 'u32[144,128]{1,0:T(1,128)}', space=vmem, size = 0x12000, scoped, tag = 'internal scratch']
  #allocation2 [shape = 'bf16[16,128]{1,0:T(16,128)(2,1)}', space=vmem, size = 0x1000, scoped, tag = 'scratch operand']
  %s0 = inlined_call_operand.hbm [shape: bf16[16,128], index: 0, kind: input, shape index: {}]
  %s1 = inlined_call_operand.hbm [shape: bf16[128,128], index: 1, kind: input, shape index: {}]
  %s2 = inlined_call_operand.vmem [shape: f32[1,128], index: 2, kind: input, shape index: {}]
  %s3 = inlined_call_operand.vmem [shape: f32[1,128], index: 3, kind: input, shape index: {}]
  %s4 = inlined_call_operand.vmem [shape: f32[1,128], index: 4, kind: input, shape index: {}]
  %s5 = inlined_call_operand.hbm [shape: bf16[128,128], index: 5, kind: input, shape index: {}]
  %s6 = inlined_call_operand.vmem [shape: f32[1,128], index: 6, kind: input, shape index: {}]
  %s7 = inlined_call_operand.hbm [shape: bf16[16,128], index: 7, kind: output, shape index: {}]
  %s8 = sld [smem:[#allocation0]]
  $region54: #{tpu_custom_call.1} parent=0
    _
  %s10 = ssub.s32 1, %s8
  %s11 = scalar_select 0, %s10, %s8
  $region1: #{tpu_custom_call.1} parent=0
    #allocation3 [shape = 'u8[4096]{0}', space=vmem, size = 0x1000, scoped, tag = 'input window, operand 0, single buffered']
    #allocation4 [shape = 's32[1]{0}', space=sflag, size = 0x4, scoped, tag = 'scoped memory for tpu_custom_call.1']
    #allocation5 [shape = 's32[1]{0}', space=sflag, size = 0x4, scoped, tag = 'scoped memory for tpu_custom_call.1']
    #allocation6 [shape = 'u8[32768]{0}', space=vmem, size = 0x8000, scoped, tag = 'input window, operand 1, single buffered']
    #allocation7 [shape = 's32[1]{0}', space=sflag, size = 0x4, scoped, tag = 'scoped memory for tpu_custom_call.1']
    #allocation8 [shape = 'u8[32768]{0}', space=vmem, size = 0x8000, scoped, tag = 'input window, operand 5, single buffered']
    #allocation9 [shape = 'u8[4096]{0}', space=vmem, size = 0x1000, scoped, tag = 'output window, operand 0, single buffered']
    %12 = vsyncpa [#allocation4], 0
    %13 = vsyncpa [#allocation7], 0
    %14 = vsyncpa [#allocation5], 0
    // Predicated region
    $region2: #{tpu_custom_call.1} parent=1 // pred_check
      _
    $region3: #{tpu_custom_call.1} parent=1 // pred_check_branch
      %16 = sbr.rel (0) target = $region5
    $region4: #{tpu_custom_call.1} parent=1 // pred_region
      %s18 = ssub.s32 128, 128
      %19 = vsyncadd [#allocation4], %s18
      %s20 = sshll.u32 [#allocation3], 4
      %s21 = int_to_ptr.vmem [resolvable:$true] %s20
      %26 = dma.hbm_to_vmem [thread:$0]  %s0, 128, %s21, [#allocation4], 64, 64, 4
    $region5: #{tpu_custom_call.1} parent=1 // pred_fallthru
      _
    // Predicated region
    $region6: #{tpu_custom_call.1} parent=1 // pred_check
      _
    $region7: #{tpu_custom_call.1} parent=1 // pred_check_branch
      %28 = sbr.rel (0) target = $region9
    $region8: #{tpu_custom_call.1} parent=1 // pred_region
      %s30 = ssub.s32 1024, 1024
      %31 = vsyncadd [#allocation7], %s30
      %s32 = sshll.u32 [#allocation6], 4
      %s33 = int_to_ptr.vmem [resolvable:$true] %s32
      %38 = dma.hbm_to_vmem [thread:$0]  %s1, 1024, %s33, [#allocation7], 64, 64, 4
    $region9: #{tpu_custom_call.1} parent=1 // pred_fallthru
      _
    // Predicated region
    $region10: #{tpu_custom_call.1} parent=1 // pred_check
      _
    $region11: #{tpu_custom_call.1} parent=1 // pred_check_branch
      %40 = sbr.rel (0) target = $region13
    $region12: #{tpu_custom_call.1} parent=1 // pred_region
      _
    $region13: #{tpu_custom_call.1} parent=1 // pred_fallthru
      _
    // Predicated region
    $region14: #{tpu_custom_call.1} parent=1 // pred_check
      _
    $region15: #{tpu_custom_call.1} parent=1 // pred_check_branch
      %42 = sbr.rel (0) target = $region17
    $region16: #{tpu_custom_call.1} parent=1 // pred_region
      _
    $region17: #{tpu_custom_call.1} parent=1 // pred_fallthru
      _
    // Predicated region
    $region18: #{tpu_custom_call.1} parent=1 // pred_check
      _
    $region19: #{tpu_custom_call.1} parent=1 // pred_check_branch
      %44 = sbr.rel (0) target = $region21
    $region20: #{tpu_custom_call.1} parent=1 // pred_region
      _
    $region21: #{tpu_custom_call.1} parent=1 // pred_fallthru
      _
    // Predicated region
    $region22: #{tpu_custom_call.1} parent=1 // pred_check
      _
    $region23: #{tpu_custom_call.1} parent=1 // pred_check_branch
      %46 = sbr.rel (0) target = $region25
    $region24: #{tpu_custom_call.1} parent=1 // pred_region
      %s48 = ssub.s32 1024, 1024
      %49 = vsyncadd [#allocation7], %s48
      %s50 = sshll.u32 [#allocation8], 4
      %s51 = int_to_ptr.vmem [resolvable:$true] %s50
      %56 = dma.hbm_to_vmem [thread:$0]  %s5, 1024, %s51, [#allocation7], 64, 64, 4
    $region25: #{tpu_custom_call.1} parent=1 // pred_fallthru
      _
    // Predicated region
    $region26: #{tpu_custom_call.1} parent=1 // pred_check
      _
    $region27: #{tpu_custom_call.1} parent=1 // pred_check_branch
      %58 = sbr.rel (0) target = $region29
    $region28: #{tpu_custom_call.1} parent=1 // pred_region
      _
    $region29: #{tpu_custom_call.1} parent=1 // pred_fallthru
      _
    // Predicated region
    $region30: #{tpu_custom_call.1} parent=1 // pred_check
      _
    $region31: #{tpu_custom_call.1} parent=1 // pred_check_branch
      %60 = sbr.rel (0) target = $region33
    $region32: #{tpu_custom_call.1} parent=1 // pred_region
      %61 = dma.done [#allocation4], 128
    $region33: #{tpu_custom_call.1} parent=1 // pred_fallthru
      _
    // Predicated region
    $region34: #{tpu_custom_call.1} parent=1 // pred_check
      _
    $region35: #{tpu_custom_call.1} parent=1 // pred_check_branch
      %63 = sbr.rel (0) target = $region37
    $region36: #{tpu_custom_call.1} parent=1 // pred_region
      %64 = dma.done [#allocation7], 1024
    $region37: #{tpu_custom_call.1} parent=1 // pred_fallthru
      _
    // Predicated region
    $region38: #{tpu_custom_call.1} parent=1 // pred_check
      _
    $region39: #{tpu_custom_call.1} parent=1 // pred_check_branch
      %66 = sbr.rel (0) target = $region41
    $region40: #{tpu_custom_call.1} parent=1 // pred_region
      %67 = dma.done [#allocation7], 1024
    $region41: #{tpu_custom_call.1} parent=1 // pred_fallthru
      _
    %p69 = scmp.eq.s32.totalorder 0, 0
    // Predicated region
    $region42: #{tpu_custom_call.1} parent=1 // pred_check
      %p70 = pneg %p69
    $region43: #{tpu_custom_call.1} parent=1 // pred_check_branch
      %72 = sbr.rel (%p70) target = $region45
    $region44: #{tpu_custom_call.1} parent=1 // pred_region
      %v73 = vld [vmem:[#allocation3] sm:$0xf]
      %v74 = vld [vmem:[#allocation3 + $0x4] sm:$0xf]
      %v75 = vld [vmem:[#allocation6] sm:$0xf]
      %v76 = vld [vmem:[#allocation6 + $0x4] sm:$0xf]
      %v77 = vld [vmem:[#allocation6 + $0x8] sm:$0xf]
      %v78 = vld [vmem:[#allocation6 + $0xc] sm:$0xf]
      %v79 = vld [vmem:[#allocation6 + $0x10] sm:$0xf]
      %v80 = vld [vmem:[#allocation6 + $0x14] sm:$0xf]
      %v81 = vld [vmem:[#allocation6 + $0x18] sm:$0xf]
      %v82 = vld [vmem:[#allocation6 + $0x1c] sm:$0xf]
      %v83 = vld [vmem:[#allocation6 + $0x20] sm:$0xf]
      %v84 = vld [vmem:[#allocation6 + $0x24] sm:$0xf]
      %v85 = vld [vmem:[#allocation6 + $0x28] sm:$0xf]
      %v86 = vld [vmem:[#allocation6 + $0x2c] sm:$0xf]
      %v87 = vld [vmem:[#allocation6 + $0x30] sm:$0xf]
      %v88 = vld [vmem:[#allocation6 + $0x34] sm:$0xf]
      %v89 = vld [vmem:[#allocation6 + $0x38] sm:$0xf]
      %v90 = vld [vmem:[#allocation6 + $0x3c] sm:$0xf]
      %v91 = vld [vmem:[%s2] sm:$0x1]
      %v93 = vlaneseq
      %v94 = vshrl.u32 %v93, 7
      %v95 = vsub.s32 0, %v94
      %v96 = vrot.slane %v91, %v95
      %v100 = vunpack.c.l.b16 %v73
      %v101 = vunpack.c.l.b16 %v74
      %v102 = vpack.c.b16 %v101, %v100
      %v120 = vunpack.c.l.b16 %v75
      %v121 = vunpack.c.l.b16 %v76
      %v122 = vunpack.c.l.b16 %v77
      %v123 = vunpack.c.l.b16 %v78
      %v124 = vunpack.c.l.b16 %v79
      %v125 = vunpack.c.l.b16 %v80
      %v126 = vunpack.c.l.b16 %v81
      %v127 = vunpack.c.l.b16 %v82
      %v128 = vunpack.c.l.b16 %v83
      %v129 = vunpack.c.l.b16 %v84
      %v130 = vunpack.c.l.b16 %v85
      %v131 = vunpack.c.l.b16 %v86
      %v132 = vunpack.c.l.b16 %v87
      %v133 = vunpack.c.l.b16 %v88
      %v134 = vunpack.c.l.b16 %v89
      %v135 = vunpack.c.l.b16 %v90
      %v136 = vpack.c.b16 %v121, %v120
      %v137 = vpack.c.b16 %v123, %v122
      %v138 = vpack.c.b16 %v125, %v124
      %v139 = vpack.c.b16 %v127, %v126
      %v140 = vpack.c.b16 %v129, %v128
      %v141 = vpack.c.b16 %v131, %v130
      %v142 = vpack.c.b16 %v133, %v132
      %v143 = vpack.c.b16 %v135, %v134
      %152 = vmatprep.subr.bf16.mxu0 0
      %153 = vmatpush1.bf16.msra.mxu0 %v136
      %154 = vmatprep.subr.bf16.mxu0 0
      %155 = vmatpush1.bf16.msra.mxu0 %v137
      %156 = vmatprep.subr.bf16.mxu0 0
      %157 = vmatpush1.bf16.msra.mxu0 %v138
      %158 = vmatprep.subr.bf16.mxu0 0
      %159 = vmatpush1.bf16.msra.mxu0 %v139
      %160 = vmatprep.subr.bf16.mxu0 0
      %161 = vmatpush1.bf16.msra.mxu0 %v140
      %162 = vmatprep.subr.bf16.mxu0 0
      %163 = vmatpush1.bf16.msra.mxu0 %v141
      %164 = vmatprep.subr.bf16.mxu0 0
      %165 = vmatpush1.bf16.msra.mxu0 %v142
      %166 = vmatprep.subr.bf16.mxu0 0
      %167 = vmatpush1.bf16.msra.mxu0 %v143
      %168 = vmatprep.subr.bf16.mxu0 0
      %169 = vmatpush1.bf16.msra.mxu0 0
      %170 = vmatprep.subr.bf16.mxu0 0
      %171 = vmatpush1.bf16.msra.mxu0 0
      %172 = vmatprep.subr.bf16.mxu0 0
      %173 = vmatpush1.bf16.msra.mxu0 0
      %174 = vmatprep.subr.bf16.mxu0 0
      %175 = vmatpush1.bf16.msra.mxu0 0
      %176 = vmatprep.subr.bf16.mxu0 0
      %177 = vmatpush1.bf16.msra.mxu0 0
      %178 = vmatprep.subr.bf16.mxu0 0
      %179 = vmatpush1.bf16.msra.mxu0 0
      %180 = vmatprep.subr.bf16.mxu0 0
      %181 = vmatpush1.bf16.msra.mxu0 0
      %182 = vmatprep.subr.bf16.mxu0 0
      %183 = vmatpush1.bf16.msra.mxu0 0
      %184 = vmatprep.mubr.bf16.mxu0 0
      %185 = vmatmul.mubr.bf16.gmra.mrb[0].mxu0 %v102
      %v186 = vpop.f32.mrb[0].mxu0
      %v187 = vadd.f32 %v96, %v186
      %v188 = vpop.f32.mrb[0].mxu0
      %v189 = vpop.f32.mrb[0].mxu0
      %v190 = vadd.f32 %v96, %v189
      %v191 = vpop.f32.mrb[0].mxu0
      %192 = vdwg.mxu0
      %v193 = vmax.f32 %v187, 0.0
      %v194 = vmax.f32 %v190, 0.0
      %195 = vadd.xlane.f32.xlu0 %v193
      %v196 = vpop.xlane.xlu0 %195
      %197 = vadd.xlane.f32.xlu0 %v194
      %v198 = vpop.xlane.xlu0 %197
      %v199 = vmul.f32 %v196, 0.03125
      %v200 = vmul.f32 %v198, 0.03125
      %v201 = vmul.f32 %v193, %v193
      %v202 = vmul.f32 %v194, %v194
      %203 = vadd.xlane.f32.xlu0 %v201
      %v204 = vpop.xlane.xlu0 %203
      %205 = vadd.xlane.f32.xlu0 %v202
      %v206 = vpop.xlane.xlu0 %205
      %v207 = vmul.f32 %v204, 0.03125
      %v208 = vmul.f32 %v206, 0.03125
      %v209 = vmul.f32 %v199, %v199
      %v210 = vmul.f32 %v200, %v200
      %v211 = vsub.f32 %v207, %v209
      %v212 = vsub.f32 %v208, %v210
      %v213 = vsub.f32 %v193, %v199
      %v214 = vsub.f32 %v194, %v200
      %v215 = vadd.f32 %v211, 1e-05
      %v216 = vadd.f32 %v212, 1e-05
      %v217 = vrsqrt.pop %v215
      %v218 = vrsqrt.pop %v216
      %v219 = vmul.f32 %v213, %v217
      %v220 = vmul.f32 %v214, %v218
      %v221 = vld [vmem:[%s3] sm:$0x1]
      %v223 = vlaneseq
      %v224 = vshrl.u32 %v223, 7
      %v225 = vsub.s32 0, %v224
      %v226 = vrot.slane %v221, %v225
      %v228 = vmul.f32 %v219, %v226
      %v229 = vmul.f32 %v220, %v226
      %v230 = vld [vmem:[%s4] sm:$0x1]
      %v232 = vlaneseq
      %v233 = vshrl.u32 %v232, 7
      %v234 = vsub.s32 0, %v233
      %v235 = vrot.slane %v230, %v234
      %v237 = vadd.f32 %v228, %v235
      %v238 = vadd.f32 %v229, %v235
      %v239 = vpack.c.bf16 %v238, %v237
      %240 = vst [vmem:[#allocation2] sm:$0xff] %v239
    $region45: #{tpu_custom_call.1} parent=1 // pred_fallthru
      _
    %v241 = vld [vmem:[#allocation2] sm:$0xff]
    %v242 = vld [vmem:[#allocation8] sm:$0xf]
    %v243 = vld [vmem:[#allocation8 + $0x4] sm:$0xf]
    %v244 = vld [vmem:[#allocation8 + $0x8] sm:$0xf]
    %v245 = vld [vmem:[#allocation8 + $0xc] sm:$0xf]
    %v246 = vld [vmem:[#allocation8 + $0x10] sm:$0xf]
    %v247 = vld [vmem:[#allocation8 + $0x14] sm:$0xf]
    %v248 = vld [vmem:[#allocation8 + $0x18] sm:$0xf]
    %v249 = vld [vmem:[#allocation8 + $0x1c] sm:$0xf]
    %v250 = vld [vmem:[#allocation8 + $0x20] sm:$0xf]
    %v251 = vld [vmem:[#allocation8 + $0x24] sm:$0xf]
    %v252 = vld [vmem:[#allocation8 + $0x28] sm:$0xf]
    %v253 = vld [vmem:[#allocation8 + $0x2c] sm:$0xf]
    %v254 = vld [vmem:[#allocation8 + $0x30] sm:$0xf]
    %v255 = vld [vmem:[#allocation8 + $0x34] sm:$0xf]
    %v256 = vld [vmem:[#allocation8 + $0x38] sm:$0xf]
    %v257 = vld [vmem:[#allocation8 + $0x3c] sm:$0xf]
    %v258 = vld [vmem:[%s6] sm:$0x1]
    %v260 = vlaneseq
    %v261 = vshrl.u32 %v260, 7
    %v262 = vsub.s32 0, %v261
    %v263 = vrot.slane %v258, %v262
    %v281 = vunpack.c.l.b16 %v242
    %v282 = vunpack.c.l.b16 %v243
    %v283 = vunpack.c.l.b16 %v244
    %v284 = vunpack.c.l.b16 %v245
    %v285 = vunpack.c.l.b16 %v246
    %v286 = vunpack.c.l.b16 %v247
    %v287 = vunpack.c.l.b16 %v248
    %v288 = vunpack.c.l.b16 %v249
    %v289 = vunpack.c.l.b16 %v250
    %v290 = vunpack.c.l.b16 %v251
    %v291 = vunpack.c.l.b16 %v252
    %v292 = vunpack.c.l.b16 %v253
    %v293 = vunpack.c.l.b16 %v254
    %v294 = vunpack.c.l.b16 %v255
    %v295 = vunpack.c.l.b16 %v256
    %v296 = vunpack.c.l.b16 %v257
    %v297 = vpack.c.b16 %v282, %v281
    %v298 = vpack.c.b16 %v284, %v283
    %v299 = vpack.c.b16 %v286, %v285
    %v300 = vpack.c.b16 %v288, %v287
    %v301 = vpack.c.b16 %v290, %v289
    %v302 = vpack.c.b16 %v292, %v291
    %v303 = vpack.c.b16 %v294, %v293
    %v304 = vpack.c.b16 %v296, %v295
    %313 = vmatprep.subr.bf16.mxu0 0
    %314 = vmatpush1.bf16.msra.mxu0 %v297
    %315 = vmatprep.subr.bf16.mxu0 0
    %316 = vmatpush1.bf16.msra.mxu0 %v298
    %317 = vmatprep.subr.bf16.mxu0 0
    %318 = vmatpush1.bf16.msra.mxu0 %v299
    %319 = vmatprep.subr.bf16.mxu0 0
    %320 = vmatpush1.bf16.msra.mxu0 %v300
    %321 = vmatprep.subr.bf16.mxu0 0
    %322 = vmatpush1.bf16.msra.mxu0 %v301
    %323 = vmatprep.subr.bf16.mxu0 0
    %324 = vmatpush1.bf16.msra.mxu0 %v302
    %325 = vmatprep.subr.bf16.mxu0 0
    %326 = vmatpush1.bf16.msra.mxu0 %v303
    %327 = vmatprep.subr.bf16.mxu0 0
    %328 = vmatpush1.bf16.msra.mxu0 %v304
    %329 = vmatprep.subr.bf16.mxu0 0
    %330 = vmatpush1.bf16.msra.mxu0 0
    %331 = vmatprep.subr.bf16.mxu0 0
    %332 = vmatpush1.bf16.msra.mxu0 0
    %333 = vmatprep.subr.bf16.mxu0 0
    %334 = vmatpush1.bf16.msra.mxu0 0
    %335 = vmatprep.subr.bf16.mxu0 0
    %336 = vmatpush1.bf16.msra.mxu0 0
    %337 = vmatprep.subr.bf16.mxu0 0
    %338 = vmatpush1.bf16.msra.mxu0 0
    %339 = vmatprep.subr.bf16.mxu0 0
    %340 = vmatpush1.bf16.msra.mxu0 0
    %341 = vmatprep.subr.bf16.mxu0 0
    %342 = vmatpush1.bf16.msra.mxu0 0
    %343 = vmatprep.subr.bf16.mxu0 0
    %344 = vmatpush1.bf16.msra.mxu0 0
    %345 = vmatprep.mubr.bf16.mxu0 0
    %346 = vmatmul.mubr.bf16.gmra.mrb[0].mxu0 %v241
    %v347 = vpop.f32.mrb[0].mxu0
    %v348 = vadd.f32 %v263, %v347
    %v349 = vpop.f32.mrb[0].mxu0
    %v350 = vpop.f32.mrb[0].mxu0
    %v351 = vadd.f32 %v263, %v350
    %v352 = vpop.f32.mrb[0].mxu0
    %353 = vdwg.mxu0
    %v354 = vpack.c.bf16 %v351, %v348
    %v356 = vunpack.c.l.b16 %v354
    %v357 = vunpack.c.h.b16 %v354
    %v358 = vpack.c.b16 %v356, %v356
    %v359 = vpack.c.b16 %v357, %v357
    %362 = vst [vmem:[#allocation9] sm:$0xf] %v358
    %363 = vst [vmem:[#allocation9 + $0x4] sm:$0xf] %v359
    // Predicated region
    $region46: #{tpu_custom_call.1} parent=1 // pred_check
      _
    $region47: #{tpu_custom_call.1} parent=1 // pred_check_branch
      %365 = sbr.rel (0) target = $region49
    $region48: #{tpu_custom_call.1} parent=1 // pred_region
      %s367 = ssub.s32 128, 128
      %368 = vsyncadd [#allocation5], %s367
      %s369 = sshll.u32 [#allocation9], 4
      %s370 = int_to_ptr.vmem [resolvable:$true] %s369
      %375 = dma.vmem_to_hbm [thread:$0]  %s370, 128, %s7, [#allocation5], 64, 64, 4
    $region49: #{tpu_custom_call.1} parent=1 // pred_fallthru
      _
    // Predicated region
    $region50: #{tpu_custom_call.1} parent=1 // pred_check
      _
    $region51: #{tpu_custom_call.1} parent=1 // pred_check_branch
      %377 = sbr.rel (0) target = $region53
    $region52: #{tpu_custom_call.1} parent=1 // pred_region
      %378 = dma.done [#allocation5], 128
    $region53: #{tpu_custom_call.1} parent=1 // pred_fallthru
      _
    %379 = vsyncpa [#allocation4], 1
    %380 = vsyncpa [#allocation7], 1
    %381 = vsyncpa [#allocation5], 1

</llo_original>
